<compile_context>
chip_gen: v7x
topology: tpu7x:2x2x1
jax: 0.10.0
libtpu: 0.0.40
codegen_flags: <defaults>
</compile_context>

<pallas_src>
import jax
import jax.numpy as jnp
from jax.experimental import pallas as pl
from jax.experimental.pallas import tpu as pltpu


def _round_up(a, b):
    return ((a + b - 1) // b) * b


def _swiglu_kernel(x_ref, w1t_ref, w3t_ref, w2t_ref, o_ref, acc_ref):
    # Grid: (row_tiles, d_ff_tiles).  Axis 1 is the reduction over d_ff for the
    # second matmul -> accumulate into fp32 scratch, write output on last step.
    @pl.when(pl.program_id(1) == 0)
    def _init():
        acc_ref[...] = jnp.zeros_like(acc_ref)

    x = x_ref[...]                                                        # (tm, d_model)

    # x @ W1.T / x @ W3.T for this d_ff tile (weights pre-transposed in wrapper).
    x1 = jnp.dot(x, w1t_ref[...], preferred_element_type=jnp.float32)    # (tm, tn) f32
    x3 = jnp.dot(x, w3t_ref[...], preferred_element_type=jnp.float32)    # (tm, tn) f32

    # SiLU in fp32; divide -> EUP exp + approx reciprocal (frees VALU slots).
    silu = x1 * pl.reciprocal(1.0 + jnp.exp(-x1), approx=True)
    h = (silu * x3).astype(w2t_ref.dtype)                                 # (tm, tn)

    acc_ref[...] += jnp.dot(h, w2t_ref[...], preferred_element_type=jnp.float32)

    @pl.when(pl.program_id(1) == pl.num_programs(1) - 1)
    def _finalize():
        o_ref[...] = acc_ref[...].astype(o_ref.dtype)


def swiglu(x, w1, w3, w2, *, tm=256, tn=512, compute_dtype=jnp.bfloat16):
    """SwiGLU FFN: (silu(x @ w1.T) * (x @ w3.T)) @ w2.T

    x: (..., d_model); w1, w3: (d_ff, d_model); w2: (d_model, d_ff).
    compute_dtype=None keeps the input dtype for the MXU operands.
    """
    orig_shape = x.shape
    orig_dtype = x.dtype
    d_model = orig_shape[-1]
    d_ff = w1.shape[0]

    x2d = x.reshape(-1, d_model)
    M = x2d.shape[0]

    # Effective tile sizes: clamp to the (padded) problem, keep TPU-friendly multiples.
    tm_eff = _round_up(min(tm, _round_up(M, 8)), 8)
    tn_eff = _round_up(min(tn, _round_up(d_ff, 128)), 128)
    Mp = _round_up(M, tm_eff)
    Fp = _round_up(d_ff, tn_eff)

    if compute_dtype is None:
        compute_dtype = orig_dtype

    # One-time wrapper-side layout & dtype prep (cast once, transpose once).
    x2d = x2d.astype(compute_dtype)
    w1t = w1.T.astype(compute_dtype)   # (d_model, d_ff)
    w3t = w3.T.astype(compute_dtype)   # (d_model, d_ff)
    w2t = w2.T.astype(compute_dtype)   # (d_ff, d_model)

    if Mp != M:
        x2d = jnp.pad(x2d, ((0, Mp - M), (0, 0)))
    if Fp != d_ff:
        w1t = jnp.pad(w1t, ((0, 0), (0, Fp - d_ff)))
        w3t = jnp.pad(w3t, ((0, 0), (0, Fp - d_ff)))
        w2t = jnp.pad(w2t, ((0, Fp - d_ff), (0, 0)))

    grid = (Mp // tm_eff, Fp // tn_eff)

    cbytes = jnp.dtype(compute_dtype).itemsize
    cost = pl.CostEstimate(
        flops=6 * Mp * d_model * Fp,
        transcendentals=Mp * Fp,
        bytes_accessed=(Mp * d_model + 3 * Fp * d_model) * cbytes
        + Mp * d_model * jnp.dtype(orig_dtype).itemsize,
    )

    out2d = pl.pallas_call(
        _swiglu_kernel,
        out_shape=jax.ShapeDtypeStruct((Mp, d_model), orig_dtype),
        grid_spec=pltpu.PrefetchScalarGridSpec(
            num_scalar_prefetch=0,
            grid=grid,
            in_specs=[
                pl.BlockSpec((tm_eff, d_model), lambda i, j: (i, 0)),   # x rows
                pl.BlockSpec((d_model, tn_eff), lambda i, j: (0, j)),   # W1.T tile
                pl.BlockSpec((d_model, tn_eff), lambda i, j: (0, j)),   # W3.T tile
                pl.BlockSpec((tn_eff, d_model), lambda i, j: (j, 0)),   # W2.T tile
            ],
            out_specs=pl.BlockSpec((tm_eff, d_model), lambda i, j: (i, 0)),
            scratch_shapes=[pltpu.VMEM((tm_eff, d_model), jnp.float32)],
        ),
        compiler_params=pltpu.CompilerParams(
            dimension_semantics=("parallel", "arbitrary"),
            vmem_limit_bytes=48 * 1024 * 1024,   # safe on v5e/v6e/v7x, > v5e 16 MiB default
        ),
        cost_estimate=cost,
    )(x2d, w1t, w3t, w2t)

    return out2d[:M].reshape(orig_shape)


def swiglu_ref(x, w1, w3, w2):
    x1 = x @ w1.T
    x3 = x @ w3.T
    silu = x1 / (1.0 + jnp.exp(-x1))
    return (silu * x3) @ w2.T


if __name__ == "__main__":
    def _make(key, batch, seq, d_model, d_ff):
        kx, k1, k2, k3 = jax.random.split(key, 4)
        x = jax.random.normal(kx, (batch, seq, d_model), dtype=jnp.float32)
        w1 = jax.random.normal(k1, (d_ff, d_model), dtype=jnp.float32) * 0.05
        w2 = jax.random.normal(k2, (d_model, d_ff), dtype=jnp.float32) * 0.05
        w3 = jax.random.normal(k3, (d_ff, d_model), dtype=jnp.float32) * 0.05
        return x, w1, w2, w3

    key = jax.random.PRNGKey(0)
    ka, kb = jax.random.split(key)

    # Case 1: batch=2, seq=8, d_model=128, d_ff=256; tn=128 -> exercises the
    # two-step d_ff reduction / fp32 accumulator path.
    x, w1, w2, w3 = _make(ka, 2, 8, 128, 256)
    out = jax.block_until_ready(swiglu(x, w1, w3, w2, tm=128, tn=128))
    ref = swiglu_ref(x, w1, w3, w2)
    assert out.shape == x.shape
    # bf16 MXU inputs (fp32 accumulation) + approx reciprocal -> relaxed tolerance.
    assert jnp.allclose(out, ref, atol=2e-2, rtol=2e-2), "mismatch vs reference (case 1)"

    # Case 2: ragged M (2*7 rows -> padded) and d_ff=192 (padded to the 128-tile).
    x, w1, w2, w3 = _make(kb, 2, 7, 128, 192)
    out = jax.block_until_ready(swiglu(x, w1, w3, w2, tm=128, tn=128))
    ref = swiglu_ref(x, w1, w3, w2)
    assert out.shape == x.shape
    assert jnp.allclose(out, ref, atol=2e-2, rtol=2e-2), "mismatch vs reference (case 2)"

    print("KERNEL_OK")
</pallas_src>

<mosaic_0001>
module attributes {stable_mosaic.version = 11 : i64} {
  func.func @_swiglu_kernel(%arg0: i32, %arg1: i32, %arg2: memref<16x128xbf16, #tpu.memory_space<vmem>>, %arg3: memref<128x128xbf16, #tpu.memory_space<vmem>>, %arg4: memref<128x128xbf16, #tpu.memory_space<vmem>>, %arg5: memref<128x128xbf16, #tpu.memory_space<vmem>>, %arg6: memref<16x128xf32, #tpu.memory_space<vmem>>, %arg7: memref<16x128xf32, #tpu.memory_space<vmem>>) attributes {dimension_semantics = [#tpu.dimension_semantics<parallel>, #tpu.dimension_semantics<arbitrary>], iteration_bounds = array<i64: 1, 2>, scalar_prefetch = 0 : i64, scratch_operands = 1 : i64, tpu.core_type = #tpu.core_type<tc>, window_params = [{transform_indices = @transform_0, window_bounds = array<i64: 16, 128>}, {transform_indices = @transform_1, window_bounds = array<i64: 128, 128>}, {transform_indices = @transform_2, window_bounds = array<i64: 128, 128>}, {transform_indices = @transform_3, window_bounds = array<i64: 128, 128>}, {transform_indices = @transform_4, window_bounds = array<i64: 16, 128>}]} {
    %c0_i32 = arith.constant 0 : i32
    %0 = arith.cmpi eq, %arg1, %c0_i32 : i32
    %1 = arith.extui %0 : i1 to i32
    %c0_i32_0 = arith.constant 0 : i32
    %2 = arith.cmpi ne, %1, %c0_i32_0 : i32
    scf.if %2 {
      %cst_17 = arith.constant 0.000000e+00 : f32
      %25 = vector.broadcast %cst_17 : f32 to vector<16x128xf32>
      %c0_18 = arith.constant 0 : index
      %c0_19 = arith.constant 0 : index
      %26 = vector.load %arg7[%c0_18, %c0_19] : memref<16x128xf32, #tpu.memory_space<vmem>>, vector<16x128xf32>
      tpu.vector_store %arg7[%c0_18, %c0_19], %25 {strides = array<i32>} : memref<16x128xf32, #tpu.memory_space<vmem>>, vector<16x128xf32>,
    } else {
    }
    %c0 = arith.constant 0 : index
    %c0_1 = arith.constant 0 : index
    %3 = vector.load %arg2[%c0, %c0_1] : memref<16x128xbf16, #tpu.memory_space<vmem>>, vector<16x128xbf16>
    %c0_2 = arith.constant 0 : index
    %c0_3 = arith.constant 0 : index
    %4 = vector.load %arg3[%c0_2, %c0_3] : memref<128x128xbf16, #tpu.memory_space<vmem>>, vector<128x128xbf16>
    %cst = arith.constant dense<0.000000e+00> : vector<16x128xf32>
    %5 = tpu.matmul %3, %4, %cst {dimension_numbers = #tpu.dot_dimension_numbers<[1], [0], [0], [1], [0, 0, 1, 1], [], []>} : vector<16x128xbf16>, vector<128x128xbf16>, vector<16x128xf32> -> vector<16x128xf32>
    %c0_4 = arith.constant 0 : index
    %c0_5 = arith.constant 0 : index
    %6 = vector.load %arg4[%c0_4, %c0_5] : memref<128x128xbf16, #tpu.memory_space<vmem>>, vector<128x128xbf16>
    %cst_6 = arith.constant dense<0.000000e+00> : vector<16x128xf32>
    %7 = tpu.matmul %3, %6, %cst_6 {dimension_numbers = #tpu.dot_dimension_numbers<[1], [0], [0], [1], [0, 0, 1, 1], [], []>} : vector<16x128xbf16>, vector<128x128xbf16>, vector<16x128xf32> -> vector<16x128xf32>
    %cst_7 = arith.constant 0.000000e+00 : f32
    %8 = vector.broadcast %cst_7 : f32 to vector<16x128xf32>
    %9 = arith.subf %8, %5 : vector<16x128xf32>
    %10 = math.exp %9 : vector<16x128xf32>
    %cst_8 = arith.constant 1.000000e+00 : f32
    %11 = vector.broadcast %cst_8 : f32 to vector<16x128xf32>
    %12 = arith.addf %11, %10 : vector<16x128xf32>
    %13 = tpu.reciprocal %12 {approx = true} : vector<16x128xf32> -> vector<16x128xf32>
    %14 = arith.mulf %5, %13 : vector<16x128xf32>
    %15 = arith.mulf %14, %7 : vector<16x128xf32>
    %16 = arith.truncf %15 : vector<16x128xf32> to vector<16x128xbf16>
    %c0_9 = arith.constant 0 : index
    %c0_10 = arith.constant 0 : index
    %17 = vector.load %arg7[%c0_9, %c0_10] : memref<16x128xf32, #tpu.memory_space<vmem>>, vector<16x128xf32>
    %c0_11 = arith.constant 0 : index
    %c0_12 = arith.constant 0 : index
    %18 = vector.load %arg5[%c0_11, %c0_12] : memref<128x128xbf16, #tpu.memory_space<vmem>>, vector<128x128xbf16>
    %cst_13 = arith.constant dense<0.000000e+00> : vector<16x128xf32>
    %19 = tpu.matmul %16, %18, %cst_13 {dimension_numbers = #tpu.dot_dimension_numbers<[1], [0], [0], [1], [0, 0, 1, 1], [], []>} : vector<16x128xbf16>, vector<128x128xbf16>, vector<16x128xf32> -> vector<16x128xf32>
    %20 = arith.addf %17, %19 : vector<16x128xf32>
    %c0_14 = arith.constant 0 : index
    %c0_15 = arith.constant 0 : index
    %21 = vector.load %arg7[%c0_14, %c0_15] : memref<16x128xf32, #tpu.memory_space<vmem>>, vector<16x128xf32>
    tpu.vector_store %arg7[%c0_14, %c0_15], %20 {strides = array<i32>} : memref<16x128xf32, #tpu.memory_space<vmem>>, vector<16x128xf32>,
    %c1_i32 = arith.constant 1 : i32
    %22 = arith.cmpi eq, %arg1, %c1_i32 : i32
    %23 = arith.extui %22 : i1 to i32
    %c0_i32_16 = arith.constant 0 : i32
    %24 = arith.cmpi ne, %23, %c0_i32_16 : i32
    scf.if %24 {
      %c0_17 = arith.constant 0 : index
      %c0_18 = arith.constant 0 : index
      %25 = vector.load %arg7[%c0_17, %c0_18] : memref<16x128xf32, #tpu.memory_space<vmem>>, vector<16x128xf32>
      %c0_19 = arith.constant 0 : index
      %c0_20 = arith.constant 0 : index
      %26 = vector.load %arg6[%c0_19, %c0_20] : memref<16x128xf32, #tpu.memory_space<vmem>>, vector<16x128xf32>
      tpu.vector_store %arg6[%c0_19, %c0_20], %25 {strides = array<i32>} : memref<16x128xf32, #tpu.memory_space<vmem>>, vector<16x128xf32>,
    } else {
    }
    return
  }
  func.func @transform_0(%arg0: i32, %arg1: i32) -> (i32, i32) {
    %c0_i32 = arith.constant 0 : i32
    %c0_i32_0 = arith.constant 0 : i32
    return %arg0, %c0_i32 : i32, i32
  }
  func.func @transform_1(%arg0: i32, %arg1: i32) -> (i32, i32) {
    %c0_i32 = arith.constant 0 : i32
    %c0_i32_0 = arith.constant 0 : i32
    return %c0_i32, %arg1 : i32, i32
  }
  func.func @transform_2(%arg0: i32, %arg1: i32) -> (i32, i32) {
    %c0_i32 = arith.constant 0 : i32
    %c0_i32_0 = arith.constant 0 : i32
    return %c0_i32, %arg1 : i32, i32
  }
  func.func @transform_3(%arg0: i32, %arg1: i32) -> (i32, i32) {
    %c0_i32 = arith.constant 0 : i32
    %c0_i32_0 = arith.constant 0 : i32
    return %arg1, %c0_i32 : i32, i32
  }
  func.func @transform_4(%arg0: i32, %arg1: i32) -> (i32, i32) {
    %c0_i32 = arith.constant 0 : i32
    %c0_i32_0 = arith.constant 0 : i32
    return %arg0, %c0_i32 : i32, i32
  }
}

</mosaic_0001>

<llo_original>
// kernel: tpu_custom_call.1
$region0: #{tpu_custom_call.1}
  #allocation0 [shape = 'u32[]', space=smem, size = 0x4, offset = 0x4, fixed_abs, tag = 'smem constant byte address 0x4 - core index']
  #allocation1 [shape = 'u32[144,128]{1,0:T(1,128)}', space=vmem, size = 0x12000, scoped, tag = 'internal scratch']
  #allocation2 [shape = 'f32[16,128]{1,0:T(8,128)}', space=vmem, size = 0x2000, scoped, tag = 'scratch operand']
  %s0 = inlined_call_operand.hbm [shape: bf16[16,128], index: 0, kind: input, shape index: {}]
  %s1 = inlined_call_operand.hbm [shape: bf16[128,256], index: 1, kind: input, shape index: {}]
  %s2 = inlined_call_operand.hbm [shape: bf16[128,256], index: 2, kind: input, shape index: {}]
  %s3 = inlined_call_operand.hbm [shape: bf16[256,128], index: 3, kind: input, shape index: {}]
  %s4 = inlined_call_operand.hbm [shape: f32[16,128], index: 4, kind: output, shape index: {}]
  %s5 = sld [smem:[#allocation0]]
  $region73: #{tpu_custom_call.1} parent=0
    _
  %s7 = ssub.s32 1, %s5
  %s8 = scalar_select 0, %s7, %s5
  $region1: #{tpu_custom_call.1} parent=0
    #allocation3 [shape = 'u8[4096]{0}', space=vmem, size = 0x1000, scoped, tag = 'input window, operand 0, single buffered']
    #allocation4 [shape = 's32[2]{0}', space=sflag, size = 0x8, scoped, tag = 'scoped memory for tpu_custom_call.1']
    #allocation5 [shape = 's32[2]{0}', space=sflag, size = 0x8, scoped, tag = 'scoped memory for tpu_custom_call.1']
    #allocation6 [shape = 'u8[65536]{0}', space=vmem, size = 0x10000, scoped, tag = 'input window, operand 1']
    #allocation7 [shape = 's32[2]{0}', space=sflag, size = 0x8, scoped, tag = 'scoped memory for tpu_custom_call.1']
    #allocation8 [shape = 'u8[65536]{0}', space=vmem, size = 0x10000, scoped, tag = 'input window, operand 2']
    #allocation9 [shape = 'u8[65536]{0}', space=vmem, size = 0x10000, scoped, tag = 'input window, operand 3']
    #allocation10 [shape = 's32[2]{0}', space=sflag, size = 0x8, scoped, tag = 'scoped memory for tpu_custom_call.1']
    #allocation11 [shape = 'u8[8192]{0}', space=vmem, size = 0x2000, scoped, tag = 'output window, operand 0, single buffered']
    %9 = vsyncpa [#allocation4], 0
    %10 = vsyncpa [#allocation7], 0
    %s11 = scalar_lea.sflag [#allocation7], 1
    %12 = vsyncpa %s11, 0
    %13 = vsyncpa [#allocation10], 0
    %s14 = scalar_lea.sflag [#allocation10], 1
    %15 = vsyncpa %s14, 0
    %16 = vsyncpa [#allocation5], 0
    loop: start=0, step=1, limit=4
    $region2: #{tpu_custom_call.1} parent=1 // loop_pre_header
      _
    $region3: #{tpu_custom_call.1} parent=1 // loop_header
      %s18 = sphi 0, %s22
      %p19 = scmp.ge.s32.totalorder %s18, 4
      %s25 = sphi 0, %s37
      %s26 = sphi 0, %s33
      %s27 = sphi 0, %s25
      %s28 = sphi 0, %s26
      %s29 = sphi 0, %s27
      %s30 = sphi 0, %s28
      %s40 = sphi 0, %s42
      %s43 = sphi 0, %s40
      %s44 = sphi 0, %s43
      %s60 = sphi 0, %s44
      %s66 = sphi 0, %s68
      %s69 = sphi 0, %s66
      %s70 = sphi 0, %s69
      %s86 = sphi 0, %s70
      %s92 = sphi 0, %s94
      %s95 = sphi 0, %s92
      %s96 = sphi 0, %s95
      %s112 = sphi 0, %s96
      %s118 = sphi 0, %s120
      %s121 = sphi 0, %s118
      %s122 = sphi 0, %s121
      %s138 = sphi 0, %s122
      %s144 = sphi 0, %s146
      %s147 = sphi 0, %s144
      %s148 = sphi 0, %s147
      %s164 = sphi 0, %s148
    $region4: #{tpu_custom_call.1} parent=1 // loop_header_branch
      %21 = sbr.rel (%p19) target = $region8
    $region5: #{tpu_custom_call.1} parent=1 // loop_body
      %s23 = ssub.s32 %s18, 1
      %s24 = ssub.s32 %s18, 2
      %s31 = sadd.s32 1, %s26
      %p32 = scmp.ge.s32.totalorder %s31, 2
      %s33 = scalar_select %p32, 0, %s31
      %s34 = sadd.s32 1, %s25
      %s35 = scalar_select %p32, %s34, %s25
      %p36 = scmp.ge.s32.totalorder %s35, 1
      %s37 = scalar_select %p36, 0, %s35
      %s38 = ssub.s32 %s25, %s37
      %p39 = scmp.eq.s32.totalorder %s38, 0
      %s41 = sadd.s32 %s40, 1
      %s42 = scalar_select %p39, %s40, %s41
      %p45 = pneg %p39
      %p46 = scmp.eq.s32.totalorder %s18, 1
      %p47 = por %p45, %p46
      %p48 = scmp.ne.s32.totalorder %s40, %s43
      %p49 = scmp.eq.s32.totalorder %s18, 0
      %p50 = por %p48, %p49
      %p51 = scmp.ne.s32.totalorder %s40, %s43
      %p52 = scmp.eq.s32.totalorder %s23, 1
      %p53 = por %p51, %p52
      %p54 = scmp.ne.s32.totalorder %s43, %s44
      %p55 = scmp.eq.s32.totalorder %s23, 0
      %p56 = por %p54, %p55
      %p57 = scmp.ne.s32.totalorder %s43, %s44
      %p58 = scmp.eq.s32.totalorder %s24, 1
      %p59 = por %p57, %p58
      %p61 = scmp.ne.s32.totalorder %s44, %s60
      %p62 = scmp.eq.s32.totalorder %s24, 0
      %p63 = por %p61, %p62
      %s64 = ssub.s32 %s26, %s33
      %p65 = scmp.eq.s32.totalorder %s64, 0
      %s67 = sadd.s32 %s66, 1
      %s68 = scalar_select %p65, %s66, %s67
      %p71 = pneg %p65
      %p72 = scmp.eq.s32.totalorder %s18, 1
      %p73 = por %p71, %p72
      %p74 = scmp.ne.s32.totalorder %s66, %s69
      %p75 = scmp.eq.s32.totalorder %s18, 0
      %p76 = por %p74, %p75
      %p77 = scmp.ne.s32.totalorder %s66, %s69
      %p78 = scmp.eq.s32.totalorder %s23, 1
      %p79 = por %p77, %p78
      %p80 = scmp.ne.s32.totalorder %s69, %s70
      %p81 = scmp.eq.s32.totalorder %s23, 0
      %p82 = por %p80, %p81
      %p83 = scmp.ne.s32.totalorder %s69, %s70
      %p84 = scmp.eq.s32.totalorder %s24, 1
      %p85 = por %p83, %p84
      %p87 = scmp.ne.s32.totalorder %s70, %s86
      %p88 = scmp.eq.s32.totalorder %s24, 0
      %p89 = por %p87, %p88
      %s90 = ssub.s32 %s26, %s33
      %p91 = scmp.eq.s32.totalorder %s90, 0
      %s93 = sadd.s32 %s92, 1
      %s94 = scalar_select %p91, %s92, %s93
      %p97 = pneg %p91
      %p98 = scmp.eq.s32.totalorder %s18, 1
      %p99 = por %p97, %p98
      %p100 = scmp.ne.s32.totalorder %s92, %s95
      %p101 = scmp.eq.s32.totalorder %s18, 0
      %p102 = por %p100, %p101
      %p103 = scmp.ne.s32.totalorder %s92, %s95
      %p104 = scmp.eq.s32.totalorder %s23, 1
      %p105 = por %p103, %p104
      %p106 = scmp.ne.s32.totalorder %s95, %s96
      %p107 = scmp.eq.s32.totalorder %s23, 0
      %p108 = por %p106, %p107
      %p109 = scmp.ne.s32.totalorder %s95, %s96
      %p110 = scmp.eq.s32.totalorder %s24, 1
      %p111 = por %p109, %p110
      %p113 = scmp.ne.s32.totalorder %s96, %s112
      %p114 = scmp.eq.s32.totalorder %s24, 0
      %p115 = por %p113, %p114
      %s116 = ssub.s32 %s26, %s33
      %p117 = scmp.eq.s32.totalorder %s116, 0
      %s119 = sadd.s32 %s118, 1
      %s120 = scalar_select %p117, %s118, %s119
      %p123 = pneg %p117
      %p124 = scmp.eq.s32.totalorder %s18, 1
      %p125 = por %p123, %p124
      %p126 = scmp.ne.s32.totalorder %s118, %s121
      %p127 = scmp.eq.s32.totalorder %s18, 0
      %p128 = por %p126, %p127
      %p129 = scmp.ne.s32.totalorder %s118, %s121
      %p130 = scmp.eq.s32.totalorder %s23, 1
      %p131 = por %p129, %p130
      %p132 = scmp.ne.s32.totalorder %s121, %s122
      %p133 = scmp.eq.s32.totalorder %s23, 0
      %p134 = por %p132, %p133
      %p135 = scmp.ne.s32.totalorder %s121, %s122
      %p136 = scmp.eq.s32.totalorder %s24, 1
      %p137 = por %p135, %p136
      %p139 = scmp.ne.s32.totalorder %s122, %s138
      %p140 = scmp.eq.s32.totalorder %s24, 0
      %p141 = por %p139, %p140
      %s142 = ssub.s32 %s25, %s37
      %p143 = scmp.eq.s32.totalorder %s142, 0
      %s145 = sadd.s32 %s144, 1
      %s146 = scalar_select %p143, %s144, %s145
      %p149 = pneg %p143
      %p150 = scmp.eq.s32.totalorder %s18, 1
      %p151 = por %p149, %p150
      %p152 = scmp.ne.s32.totalorder %s144, %s147
      %p153 = scmp.eq.s32.totalorder %s18, 0
      %p154 = por %p152, %p153
      %p155 = scmp.ne.s32.totalorder %s144, %s147
      %p156 = scmp.eq.s32.totalorder %s23, 1
      %p157 = por %p155, %p156
      %p158 = scmp.ne.s32.totalorder %s147, %s148
      %p159 = scmp.eq.s32.totalorder %s23, 0
      %p160 = por %p158, %p159
      %p161 = scmp.ne.s32.totalorder %s147, %s148
      %p162 = scmp.eq.s32.totalorder %s24, 1
      %p163 = por %p161, %p162
      %p165 = scmp.ne.s32.totalorder %s148, %s164
      %p166 = scmp.eq.s32.totalorder %s24, 0
      %p167 = por %p165, %p166
      %p168 = scmp.le.s32.totalorder 1, %s18
      %p169 = scmp.lt.s32.totalorder %s18, 3
      %p170 = pnand %p168, %p169
      %p171 = pneg %p170
      // Predicated region
      $region9: #{tpu_custom_call.1} parent=5 // pred_check
        _
      $region10: #{tpu_custom_call.1} parent=5 // pred_check_branch
        %173 = sbr.rel (%p170) target = $region12
      $region11: #{tpu_custom_call.1} parent=5 // pred_region
        %s174 = ssub.s32 %s18, 1
        // Predicated region
        $region13: #{tpu_custom_call.1} parent=11 // pred_check
          %p175 = pneg %p56
        $region14: #{tpu_custom_call.1} parent=11 // pred_check_branch
          %177 = sbr.rel (%p175) target = $region16
        $region15: #{tpu_custom_call.1} parent=11 // pred_region
          %s178 = smul.u32 2, %s27
          %s180 = ssub.s32 128, 128
          %181 = vsyncadd [#allocation4], %s180
          %s182 = smul.addr %s178, 64
          %s183 = scalar_lea.hbm %s0, %s182
          %s184 = sshll.u32 [#allocation3], 4
          %s185 = int_to_ptr.vmem [resolvable:$true] %s184
          %190 = dma.hbm_to_vmem [thread:$0]  %s183, 128, %s185, [#allocation4], 64, 64, 4
        $region16: #{tpu_custom_call.1} parent=11 // pred_fallthru
          _
      $region12: #{tpu_custom_call.1} parent=5 // pred_fallthru
        _
      %p191 = scmp.lt.s32.totalorder %s18, 2
      // Predicated region
      $region17: #{tpu_custom_call.1} parent=5 // pred_check
        %p192 = pneg %p191
      $region18: #{tpu_custom_call.1} parent=5 // pred_check_branch
        %194 = sbr.rel (%p192) target = $region20
      $region19: #{tpu_custom_call.1} parent=5 // pred_region
        // Predicated region
        $region21: #{tpu_custom_call.1} parent=19 // pred_check
          %p195 = pneg %p76
        $region22: #{tpu_custom_call.1} parent=19 // pred_check_branch
          %197 = sbr.rel (%p195) target = $region24
        $region23: #{tpu_custom_call.1} parent=19 // pred_region
          %s198 = sand.u32 %s18, 1
          %s199 = scalar_lea.sflag [#allocation7], %s198
          %s200 = sand.u32 %s66, 1
          %s201 = smul.addr %s200, 64
          %s202 = scalar_lea.vmem [#allocation6], %s201
          %s204 = ssub.s32 1024, 1024
          %205 = vsyncadd %s199, %s204
          %s206 = smul.addr %s26, 64
          %s207 = scalar_lea.hbm %s1, %s206
          %s208 = sshll.u32 %s202, 4
          %s209 = int_to_ptr.vmem [resolvable:$true] %s208
          %214 = dma.hbm_to_vmem [thread:$0]  %s207, 1024, %s209, %s199, 128, 64, 4
        $region24: #{tpu_custom_call.1} parent=19 // pred_fallthru
          _
        // Predicated region
        $region25: #{tpu_custom_call.1} parent=19 // pred_check
          %p215 = pneg %p102
        $region26: #{tpu_custom_call.1} parent=19 // pred_check_branch
          %217 = sbr.rel (%p215) target = $region28
        $region27: #{tpu_custom_call.1} parent=19 // pred_region
          %s218 = sand.u32 %s18, 1
          %s219 = scalar_lea.sflag [#allocation7], %s218
          %s220 = sand.u32 %s92, 1
          %s221 = smul.addr %s220, 64
          %s222 = scalar_lea.vmem [#allocation8], %s221
          %s224 = ssub.s32 1024, 1024
          %225 = vsyncadd %s219, %s224
          %s226 = smul.addr %s26, 64
          %s227 = scalar_lea.hbm %s2, %s226
          %s228 = sshll.u32 %s222, 4
          %s229 = int_to_ptr.vmem [resolvable:$true] %s228
          %234 = dma.hbm_to_vmem [thread:$0]  %s227, 1024, %s229, %s219, 128, 64, 4
        $region28: #{tpu_custom_call.1} parent=19 // pred_fallthru
          _
        // Predicated region
        $region29: #{tpu_custom_call.1} parent=19 // pred_check
          %p235 = pneg %p128
        $region30: #{tpu_custom_call.1} parent=19 // pred_check_branch
          %237 = sbr.rel (%p235) target = $region32
        $region31: #{tpu_custom_call.1} parent=19 // pred_region
          %s238 = sand.u32 %s118, 1
          %s239 = scalar_lea.sflag [#allocation10], %s238
          %s240 = sand.u32 %s118, 1
          %s241 = smul.addr %s240, 64
          %s242 = scalar_lea.vmem [#allocation9], %s241
          %s243 = smul.u32 16, %s26
          %s245 = ssub.s32 1024, 1024
          %246 = vsyncadd %s239, %s245
          %s247 = smul.addr %s243, 64
          %s248 = scalar_lea.hbm %s3, %s247
          %s249 = sshll.u32 %s242, 4
          %s250 = int_to_ptr.vmem [resolvable:$true] %s249
          %255 = dma.hbm_to_vmem [thread:$0]  %s248, 1024, %s250, %s239, 64, 64, 4
        $region32: #{tpu_custom_call.1} parent=19 // pred_fallthru
          _
      $region20: #{tpu_custom_call.1} parent=5 // pred_fallthru
        _
      %p256 = scmp.le.s32.totalorder 1, %s18
      %p257 = scmp.lt.s32.totalorder %s18, 3
      %p258 = pnand %p256, %p257
      %p259 = pneg %p258
      // Predicated region
      $region33: #{tpu_custom_call.1} parent=5 // pred_check
        _
      $region34: #{tpu_custom_call.1} parent=5 // pred_check_branch
        %261 = sbr.rel (%p258) target = $region36
      $region35: #{tpu_custom_call.1} parent=5 // pred_region
        %s262 = ssub.s32 %s18, 1
        // Predicated region
        $region37: #{tpu_custom_call.1} parent=35 // pred_check
          %p263 = pneg %p56
        $region38: #{tpu_custom_call.1} parent=35 // pred_check_branch
          %265 = sbr.rel (%p263) target = $region40
        $region39: #{tpu_custom_call.1} parent=35 // pred_region
          %266 = dma.done [#allocation4], 128
        $region40: #{tpu_custom_call.1} parent=35 // pred_fallthru
          _
        %s267 = sand.u32 %s23, 1
        %s268 = scalar_lea.sflag [#allocation7], %s267
        %s269 = sand.u32 %s69, 1
        %s270 = smul.addr %s269, 64
        %s271 = scalar_lea.vmem [#allocation6], %s270
        // Predicated region
        $region41: #{tpu_custom_call.1} parent=35 // pred_check
          %p272 = pneg %p82
        $region42: #{tpu_custom_call.1} parent=35 // pred_check_branch
          %274 = sbr.rel (%p272) target = $region44
        $region43: #{tpu_custom_call.1} parent=35 // pred_region
          %275 = dma.done %s268, 1024
        $region44: #{tpu_custom_call.1} parent=35 // pred_fallthru
          _
        %s276 = sand.u32 %s23, 1
        %s277 = scalar_lea.sflag [#allocation7], %s276
        %s278 = sand.u32 %s95, 1
        %s279 = smul.addr %s278, 64
        %s280 = scalar_lea.vmem [#allocation8], %s279
        // Predicated region
        $region45: #{tpu_custom_call.1} parent=35 // pred_check
          %p281 = pneg %p108
        $region46: #{tpu_custom_call.1} parent=35 // pred_check_branch
          %283 = sbr.rel (%p281) target = $region48
        $region47: #{tpu_custom_call.1} parent=35 // pred_region
          %284 = dma.done %s277, 1024
        $region48: #{tpu_custom_call.1} parent=35 // pred_fallthru
          _
        %s285 = sand.u32 %s121, 1
        %s286 = scalar_lea.sflag [#allocation10], %s285
        %s287 = sand.u32 %s121, 1
        %s288 = smul.addr %s287, 64
        %s289 = scalar_lea.vmem [#allocation9], %s288
        // Predicated region
        $region49: #{tpu_custom_call.1} parent=35 // pred_check
          %p290 = pneg %p134
        $region50: #{tpu_custom_call.1} parent=35 // pred_check_branch
          %292 = sbr.rel (%p290) target = $region52
        $region51: #{tpu_custom_call.1} parent=35 // pred_region
          %293 = dma.done %s286, 1024
        $region52: #{tpu_custom_call.1} parent=35 // pred_fallthru
          _
        %p294 = pneg %p56
        %p295 = pneg %p53
        %s296 = sand.u32 %s23, 1
        %s297 = scalar_lea.sflag [#allocation7], %s296
        %s298 = sand.u32 %s69, 1
        %s299 = smul.addr %s298, 64
        %s300 = scalar_lea.vmem [#allocation6], %s299
        %p301 = pneg %p82
        %p302 = pneg %p79
        %s303 = sand.u32 %s23, 1
        %s304 = scalar_lea.sflag [#allocation7], %s303
        %s305 = sand.u32 %s95, 1
        %s306 = smul.addr %s305, 64
        %s307 = scalar_lea.vmem [#allocation8], %s306
        %p308 = pneg %p108
        %p309 = pneg %p105
        %s310 = sand.u32 %s121, 1
        %s311 = scalar_lea.sflag [#allocation10], %s310
        %s312 = sand.u32 %s121, 1
        %s313 = smul.addr %s312, 64
        %s314 = scalar_lea.vmem [#allocation9], %s313
        %p315 = pneg %p134
        %p316 = pneg %p131
        %p317 = pneg %p160
        %p318 = pneg %p157
        %s319 = smul.u32 2, %s27
        %s320 = smul.u32 16, %s28
        %s321 = smul.u32 2, %s27
        %p323 = scmp.eq.s32.totalorder %s28, 0
        // Predicated region
        $region53: #{tpu_custom_call.1} parent=35 // pred_check
          %p324 = pneg %p323
        $region54: #{tpu_custom_call.1} parent=35 // pred_check_branch
          %326 = sbr.rel (%p324) target = $region56
        $region55: #{tpu_custom_call.1} parent=35 // pred_region
          %327 = vst [vmem:[#allocation2] sm:$0xff] 0.0
          %328 = vst [vmem:[#allocation2 + $0x8] sm:$0xff] 0.0
        $region56: #{tpu_custom_call.1} parent=35 // pred_fallthru
          _
        %v329 = vld [vmem:[#allocation3] sm:$0xf]
        %v330 = vld [vmem:[#allocation3 + $0x4] sm:$0xf]
        %v331 = vld [vmem:[%s271] sm:$0xf]
        %v332 = vld [vmem:[%s271 + $0x4] sm:$0xf]
        %v333 = vld [vmem:[%s271 + $0x8] sm:$0xf]
        %v334 = vld [vmem:[%s271 + $0xc] sm:$0xf]
        %v335 = vld [vmem:[%s271 + $0x10] sm:$0xf]
        %v336 = vld [vmem:[%s271 + $0x14] sm:$0xf]
        %v337 = vld [vmem:[%s271 + $0x18] sm:$0xf]
        %v338 = vld [vmem:[%s271 + $0x1c] sm:$0xf]
        %v339 = vld [vmem:[%s271 + $0x20] sm:$0xf]
        %v340 = vld [vmem:[%s271 + $0x24] sm:$0xf]
        %v341 = vld [vmem:[%s271 + $0x28] sm:$0xf]
        %v342 = vld [vmem:[%s271 + $0x2c] sm:$0xf]
        %v343 = vld [vmem:[%s271 + $0x30] sm:$0xf]
        %v344 = vld [vmem:[%s271 + $0x34] sm:$0xf]
        %v345 = vld [vmem:[%s271 + $0x38] sm:$0xf]
        %v346 = vld [vmem:[%s271 + $0x3c] sm:$0xf]
        %v349 = vunpack.c.l.b16 %v329
        %v350 = vunpack.c.l.b16 %v330
        %v351 = vpack.c.b16 %v350, %v349
        %v369 = vunpack.c.l.b16 %v331
        %v370 = vunpack.c.l.b16 %v332
        %v371 = vunpack.c.l.b16 %v333
        %v372 = vunpack.c.l.b16 %v334
        %v373 = vunpack.c.l.b16 %v335
        %v374 = vunpack.c.l.b16 %v336
        %v375 = vunpack.c.l.b16 %v337
        %v376 = vunpack.c.l.b16 %v338
        %v377 = vunpack.c.l.b16 %v339
        %v378 = vunpack.c.l.b16 %v340
        %v379 = vunpack.c.l.b16 %v341
        %v380 = vunpack.c.l.b16 %v342
        %v381 = vunpack.c.l.b16 %v343
        %v382 = vunpack.c.l.b16 %v344
        %v383 = vunpack.c.l.b16 %v345
        %v384 = vunpack.c.l.b16 %v346
        %v385 = vpack.c.b16 %v370, %v369
        %v386 = vpack.c.b16 %v372, %v371
        %v387 = vpack.c.b16 %v374, %v373
        %v388 = vpack.c.b16 %v376, %v375
        %v389 = vpack.c.b16 %v378, %v377
        %v390 = vpack.c.b16 %v380, %v379
        %v391 = vpack.c.b16 %v382, %v381
        %v392 = vpack.c.b16 %v384, %v383
        %401 = vmatprep.subr.bf16.mxu0 0
        %402 = vmatpush1.bf16.msra.mxu0 %v385
        %403 = vmatprep.subr.bf16.mxu0 0
        %404 = vmatpush1.bf16.msra.mxu0 %v386
        %405 = vmatprep.subr.bf16.mxu0 0
        %406 = vmatpush1.bf16.msra.mxu0 %v387
        %407 = vmatprep.subr.bf16.mxu0 0
        %408 = vmatpush1.bf16.msra.mxu0 %v388
        %409 = vmatprep.subr.bf16.mxu0 0
        %410 = vmatpush1.bf16.msra.mxu0 %v389
        %411 = vmatprep.subr.bf16.mxu0 0
        %412 = vmatpush1.bf16.msra.mxu0 %v390
        %413 = vmatprep.subr.bf16.mxu0 0
        %414 = vmatpush1.bf16.msra.mxu0 %v391
        %415 = vmatprep.subr.bf16.mxu0 0
        %416 = vmatpush1.bf16.msra.mxu0 %v392
        %417 = vmatprep.subr.bf16.mxu0 0
        %418 = vmatpush1.bf16.msra.mxu0 0
        %419 = vmatprep.subr.bf16.mxu0 0
        %420 = vmatpush1.bf16.msra.mxu0 0
        %421 = vmatprep.subr.bf16.mxu0 0
        %422 = vmatpush1.bf16.msra.mxu0 0
        %423 = vmatprep.subr.bf16.mxu0 0
        %424 = vmatpush1.bf16.msra.mxu0 0
        %425 = vmatprep.subr.bf16.mxu0 0
        %426 = vmatpush1.bf16.msra.mxu0 0
        %427 = vmatprep.subr.bf16.mxu0 0
        %428 = vmatpush1.bf16.msra.mxu0 0
        %429 = vmatprep.subr.bf16.mxu0 0
        %430 = vmatpush1.bf16.msra.mxu0 0
        %431 = vmatprep.subr.bf16.mxu0 0
        %432 = vmatpush1.bf16.msra.mxu0 0
        %433 = vmatprep.mubr.bf16.mxu0 0
        %434 = vmatmul.mubr.bf16.gmra.mrb[0].mxu0 %v351
        %v435 = vpop.f32.mrb[0].mxu0
        %v436 = vadd.f32 0.0, %v435
        %v437 = vpop.f32.mrb[0].mxu0
        %v438 = vpop.f32.mrb[0].mxu0
        %v439 = vadd.f32 0.0, %v438
        %v440 = vpop.f32.mrb[0].mxu0
        %441 = vdwg.mxu0
        %v442 = vld [vmem:[%s280] sm:$0xf]
        %v443 = vld [vmem:[%s280 + $0x4] sm:$0xf]
        %v444 = vld [vmem:[%s280 + $0x8] sm:$0xf]
        %v445 = vld [vmem:[%s280 + $0xc] sm:$0xf]
        %v446 = vld [vmem:[%s280 + $0x10] sm:$0xf]
        %v447 = vld [vmem:[%s280 + $0x14] sm:$0xf]
        %v448 = vld [vmem:[%s280 + $0x18] sm:$0xf]
        %v449 = vld [vmem:[%s280 + $0x1c] sm:$0xf]
        %v450 = vld [vmem:[%s280 + $0x20] sm:$0xf]
        %v451 = vld [vmem:[%s280 + $0x24] sm:$0xf]
        %v452 = vld [vmem:[%s280 + $0x28] sm:$0xf]
        %v453 = vld [vmem:[%s280 + $0x2c] sm:$0xf]
        %v454 = vld [vmem:[%s280 + $0x30] sm:$0xf]
        %v455 = vld [vmem:[%s280 + $0x34] sm:$0xf]
        %v456 = vld [vmem:[%s280 + $0x38] sm:$0xf]
        %v457 = vld [vmem:[%s280 + $0x3c] sm:$0xf]
        %v474 = vunpack.c.l.b16 %v442
        %v475 = vunpack.c.l.b16 %v443
        %v476 = vunpack.c.l.b16 %v444
        %v477 = vunpack.c.l.b16 %v445
        %v478 = vunpack.c.l.b16 %v446
        %v479 = vunpack.c.l.b16 %v447
        %v480 = vunpack.c.l.b16 %v448
        %v481 = vunpack.c.l.b16 %v449
        %v482 = vunpack.c.l.b16 %v450
        %v483 = vunpack.c.l.b16 %v451
        %v484 = vunpack.c.l.b16 %v452
        %v485 = vunpack.c.l.b16 %v453
        %v486 = vunpack.c.l.b16 %v454
        %v487 = vunpack.c.l.b16 %v455
        %v488 = vunpack.c.l.b16 %v456
        %v489 = vunpack.c.l.b16 %v457
        %v490 = vpack.c.b16 %v475, %v474
        %v491 = vpack.c.b16 %v477, %v476
        %v492 = vpack.c.b16 %v479, %v478
        %v493 = vpack.c.b16 %v481, %v480
        %v494 = vpack.c.b16 %v483, %v482
        %v495 = vpack.c.b16 %v485, %v484
        %v496 = vpack.c.b16 %v487, %v486
        %v497 = vpack.c.b16 %v489, %v488
        %506 = vmatprep.subr.bf16.mxu0 0
        %507 = vmatpush1.bf16.msra.mxu0 %v490
        %508 = vmatprep.subr.bf16.mxu0 0
        %509 = vmatpush1.bf16.msra.mxu0 %v491
        %510 = vmatprep.subr.bf16.mxu0 0
        %511 = vmatpush1.bf16.msra.mxu0 %v492
        %512 = vmatprep.subr.bf16.mxu0 0
        %513 = vmatpush1.bf16.msra.mxu0 %v493
        %514 = vmatprep.subr.bf16.mxu0 0
        %515 = vmatpush1.bf16.msra.mxu0 %v494
        %516 = vmatprep.subr.bf16.mxu0 0
        %517 = vmatpush1.bf16.msra.mxu0 %v495
        %518 = vmatprep.subr.bf16.mxu0 0
        %519 = vmatpush1.bf16.msra.mxu0 %v496
        %520 = vmatprep.subr.bf16.mxu0 0
        %521 = vmatpush1.bf16.msra.mxu0 %v497
        %522 = vmatprep.subr.bf16.mxu0 0
        %523 = vmatpush1.bf16.msra.mxu0 0
        %524 = vmatprep.subr.bf16.mxu0 0
        %525 = vmatpush1.bf16.msra.mxu0 0
        %526 = vmatprep.subr.bf16.mxu0 0
        %527 = vmatpush1.bf16.msra.mxu0 0
        %528 = vmatprep.subr.bf16.mxu0 0
        %529 = vmatpush1.bf16.msra.mxu0 0
        %530 = vmatprep.subr.bf16.mxu0 0
        %531 = vmatpush1.bf16.msra.mxu0 0
        %532 = vmatprep.subr.bf16.mxu0 0
        %533 = vmatpush1.bf16.msra.mxu0 0
        %534 = vmatprep.subr.bf16.mxu0 0
        %535 = vmatpush1.bf16.msra.mxu0 0
        %536 = vmatprep.subr.bf16.mxu0 0
        %537 = vmatpush1.bf16.msra.mxu0 0
        %538 = vmatprep.mubr.bf16.mxu0 0
        %539 = vmatmul.mubr.bf16.gmra.mrb[0].mxu0 %v351
        %v540 = vpop.f32.mrb[0].mxu0
        %v541 = vadd.f32 0.0, %v540
        %v542 = vpop.f32.mrb[0].mxu0
        %v543 = vpop.f32.mrb[0].mxu0
        %v544 = vadd.f32 0.0, %v543
        %v545 = vpop.f32.mrb[0].mxu0
        %546 = vdwg.mxu0
        %v547 = vsub.f32 0.0, %v436
        %v548 = vsub.f32 0.0, %v439
        %v549 = vmul.f32 %v547, 1.442695
        %v550 = vpow.pop %v549
        %v551 = vmul.f32 %v548, 1.442695
        %v552 = vpow.pop %v551
        %v553 = vadd.f32 %v550, 1.0
        %v554 = vadd.f32 %v552, 1.0
        %v555 = vrcp.pop %v553
        %v556 = vrcp.pop %v554
        %v557 = vmul.f32 %v436, %v555
        %v558 = vmul.f32 %v439, %v556
        %v559 = vmul.f32 %v557, %v541
        %v560 = vmul.f32 %v558, %v544
        %v561 = vpack.c.bf16 %v560, %v559
        %v562 = vld [vmem:[#allocation2] sm:$0xff]
        %v563 = vld [vmem:[#allocation2 + $0x8] sm:$0xff]
        %v564 = vld [vmem:[%s289] sm:$0xf]
        %v565 = vld [vmem:[%s289 + $0x4] sm:$0xf]
        %v566 = vld [vmem:[%s289 + $0x8] sm:$0xf]
        %v567 = vld [vmem:[%s289 + $0xc] sm:$0xf]
        %v568 = vld [vmem:[%s289 + $0x10] sm:$0xf]
        %v569 = vld [vmem:[%s289 + $0x14] sm:$0xf]
        %v570 = vld [vmem:[%s289 + $0x18] sm:$0xf]
        %v571 = vld [vmem:[%s289 + $0x1c] sm:$0xf]
        %v572 = vld [vmem:[%s289 + $0x20] sm:$0xf]
        %v573 = vld [vmem:[%s289 + $0x24] sm:$0xf]
        %v574 = vld [vmem:[%s289 + $0x28] sm:$0xf]
        %v575 = vld [vmem:[%s289 + $0x2c] sm:$0xf]
        %v576 = vld [vmem:[%s289 + $0x30] sm:$0xf]
        %v577 = vld [vmem:[%s289 + $0x34] sm:$0xf]
        %v578 = vld [vmem:[%s289 + $0x38] sm:$0xf]
        %v579 = vld [vmem:[%s289 + $0x3c] sm:$0xf]
        %v596 = vunpack.c.l.b16 %v564
        %v597 = vunpack.c.l.b16 %v565
        %v598 = vunpack.c.l.b16 %v566
        %v599 = vunpack.c.l.b16 %v567
        %v600 = vunpack.c.l.b16 %v568
        %v601 = vunpack.c.l.b16 %v569
        %v602 = vunpack.c.l.b16 %v570
        %v603 = vunpack.c.l.b16 %v571
        %v604 = vunpack.c.l.b16 %v572
        %v605 = vunpack.c.l.b16 %v573
        %v606 = vunpack.c.l.b16 %v574
        %v607 = vunpack.c.l.b16 %v575
        %v608 = vunpack.c.l.b16 %v576
        %v609 = vunpack.c.l.b16 %v577
        %v610 = vunpack.c.l.b16 %v578
        %v611 = vunpack.c.l.b16 %v579
        %v612 = vpack.c.b16 %v597, %v596
        %v613 = vpack.c.b16 %v599, %v598
        %v614 = vpack.c.b16 %v601, %v600
        %v615 = vpack.c.b16 %v603, %v602
        %v616 = vpack.c.b16 %v605, %v604
        %v617 = vpack.c.b16 %v607, %v606
        %v618 = vpack.c.b16 %v609, %v608
        %v619 = vpack.c.b16 %v611, %v610
        %628 = vmatprep.subr.bf16.mxu0 0
        %629 = vmatpush1.bf16.msra.mxu0 %v612
        %630 = vmatprep.subr.bf16.mxu0 0
        %631 = vmatpush1.bf16.msra.mxu0 %v613
        %632 = vmatprep.subr.bf16.mxu0 0
        %633 = vmatpush1.bf16.msra.mxu0 %v614
        %634 = vmatprep.subr.bf16.mxu0 0
        %635 = vmatpush1.bf16.msra.mxu0 %v615
        %636 = vmatprep.subr.bf16.mxu0 0
        %637 = vmatpush1.bf16.msra.mxu0 %v616
        %638 = vmatprep.subr.bf16.mxu0 0
        %639 = vmatpush1.bf16.msra.mxu0 %v617
        %640 = vmatprep.subr.bf16.mxu0 0
        %641 = vmatpush1.bf16.msra.mxu0 %v618
        %642 = vmatprep.subr.bf16.mxu0 0
        %643 = vmatpush1.bf16.msra.mxu0 %v619
        %644 = vmatprep.subr.bf16.mxu0 0
        %645 = vmatpush1.bf16.msra.mxu0 0
        %646 = vmatprep.subr.bf16.mxu0 0
        %647 = vmatpush1.bf16.msra.mxu0 0
        %648 = vmatprep.subr.bf16.mxu0 0
        %649 = vmatpush1.bf16.msra.mxu0 0
        %650 = vmatprep.subr.bf16.mxu0 0
        %651 = vmatpush1.bf16.msra.mxu0 0
        %652 = vmatprep.subr.bf16.mxu0 0
        %653 = vmatpush1.bf16.msra.mxu0 0
        %654 = vmatprep.subr.bf16.mxu0 0
        %655 = vmatpush1.bf16.msra.mxu0 0
        %656 = vmatprep.subr.bf16.mxu0 0
        %657 = vmatpush1.bf16.msra.mxu0 0
        %658 = vmatprep.subr.bf16.mxu0 0
        %659 = vmatpush1.bf16.msra.mxu0 0
        %660 = vmatprep.mubr.bf16.mxu0 0
        %661 = vmatmul.mubr.bf16.gmra.mrb[0].mxu0 %v561
        %v662 = vpop.f32.mrb[0].mxu0
        %v663 = vadd.f32 0.0, %v662
        %v664 = vpop.f32.mrb[0].mxu0
        %v665 = vpop.f32.mrb[0].mxu0
        %v666 = vadd.f32 0.0, %v665
        %v667 = vpop.f32.mrb[0].mxu0
        %668 = vdwg.mxu0
        %v669 = vadd.f32 %v562, %v663
        %v670 = vadd.f32 %v563, %v666
        %671 = vst [vmem:[#allocation2] sm:$0xff] %v669
        %672 = vst [vmem:[#allocation2 + $0x8] sm:$0xff] %v670
        %p673 = scmp.eq.s32.totalorder %s28, 1
        // Predicated region
        $region57: #{tpu_custom_call.1} parent=35 // pred_check
          %p674 = pneg %p673
        $region58: #{tpu_custom_call.1} parent=35 // pred_check_branch
          %676 = sbr.rel (%p674) target = $region60
        $region59: #{tpu_custom_call.1} parent=35 // pred_region
          %v677 = vld [vmem:[#allocation2] sm:$0xff]
          %v678 = vld [vmem:[#allocation2 + $0x8] sm:$0xff]
          %679 = vst [vmem:[#allocation11] sm:$0xff] %v677
          %680 = vst [vmem:[#allocation11 + $0x8] sm:$0xff] %v678
        $region60: #{tpu_custom_call.1} parent=35 // pred_fallthru
          _
        // Predicated region
        $region61: #{tpu_custom_call.1} parent=35 // pred_check
          %p681 = pneg %p157
        $region62: #{tpu_custom_call.1} parent=35 // pred_check_branch
          %683 = sbr.rel (%p681) target = $region64
        $region63: #{tpu_custom_call.1} parent=35 // pred_region
          %s684 = smul.u32 2, %s27
          %s686 = ssub.s32 256, 256
          %687 = vsyncadd [#allocation5], %s686
          %s688 = smul.addr %s684, 128
          %s689 = scalar_lea.hbm %s4, %s688
          %s690 = sshll.u32 [#allocation11], 4
          %s691 = int_to_ptr.vmem [resolvable:$true] %s690
          %696 = dma.vmem_to_hbm [thread:$0]  %s691, 256, %s689, [#allocation5], 128, 128, 8
        $region64: #{tpu_custom_call.1} parent=35 // pred_fallthru
          _
        // Predicated region
        $region65: #{tpu_custom_call.1} parent=35 // pred_check
          %p697 = pneg %p157
        $region66: #{tpu_custom_call.1} parent=35 // pred_check_branch
          %699 = sbr.rel (%p697) target = $region68
        $region67: #{tpu_custom_call.1} parent=35 // pred_region
          %700 = dma.done [#allocation5], 256
        $region68: #{tpu_custom_call.1} parent=35 // pred_fallthru
          _
      $region36: #{tpu_custom_call.1} parent=5 // pred_fallthru
        _
      %p701 = scmp.le.s32.totalorder 2, %s18
      // Predicated region
      $region69: #{tpu_custom_call.1} parent=5 // pred_check
        %p702 = pneg %p701
      $region70: #{tpu_custom_call.1} parent=5 // pred_check_branch
        %704 = sbr.rel (%p702) target = $region72
      $region71: #{tpu_custom_call.1} parent=5 // pred_region
        %s705 = ssub.s32 %s18, 2
      $region72: #{tpu_custom_call.1} parent=5 // pred_fallthru
        _
    $region6: #{tpu_custom_call.1} parent=1 // loop_footer
      %s22 = sadd.s32 1, %s18
    $region7: #{tpu_custom_call.1} parent=1 // loop_footer_branch
      %17 = sbr.rel target = $region3
    $region8: #{tpu_custom_call.1} parent=1 // loop_exit
      _
    %706 = vsyncpa [#allocation4], 1
    %s707 = scalar_lea.sflag [#allocation4], 1
    %708 = vsyncpa %s707, 1
    %709 = vsyncpa [#allocation7], 1
    %s710 = scalar_lea.sflag [#allocation7], 1
    %711 = vsyncpa %s710, 1
    %712 = vsyncpa [#allocation10], 1
    %s713 = scalar_lea.sflag [#allocation10], 1
    %714 = vsyncpa %s713, 1
    %715 = vsyncpa [#allocation5], 1
    %s716 = scalar_lea.sflag [#allocation5], 1
    %717 = vsyncpa %s716, 1

</llo_original>
